<compile_context>
chip_gen: v7x
topology: tpu7x:2x2x1
jax: 0.10.0
libtpu: 0.0.40
codegen_flags: <defaults>
</compile_context>

<pallas_src>
import functools

import jax
import jax.numpy as jnp
from jax.experimental import pallas as pl
from jax.experimental.pallas import tpu as pltpu


def _round_up(v: int, m: int) -> int:
    return ((v + m - 1) // m) * m


def _adv_loss_kernel(x_ref, o_ref, acc_ref, *, total_rows: int):
    """One [TB, C] logits tile -> accumulate sum(log(1 - p_last * w))."""
    i = pl.program_id(0)

    @pl.when(i == 0)
    def _init():
        acc_ref[...] = jnp.zeros_like(acc_ref)

    x = x_ref[...].astype(jnp.float32)                 # [TB, C]
    tb, c = x.shape

    # Numerically stable softmax; only the last class probability is needed.
    m = jnp.max(x, axis=1, keepdims=True)              # [TB, 1]
    x_last = x[:, c - 1:c]                             # [TB, 1] (slice logits, not exp)
    e = jnp.exp(x - m)                                 # [TB, C] (EUP)
    s = jnp.sum(e, axis=1, keepdims=True)              # [TB, 1]
    p_last = jnp.exp(x_last - m) * pl.reciprocal(s, approx=False)

    # Soft weight: rows where the last-class prob is exactly 1 get 1 - 1e-6.
    w = jnp.where(p_last == 1.0,
                  jnp.float32(1.0 - 1e-6),
                  jnp.float32(1.0))                    # [TB, 1]
    per_row = jnp.log(1.0 - p_last * w)                # [TB, 1]

    # Mask zero-padded remainder rows so they do not pollute the mean.
    rows = i * tb + jax.lax.broadcasted_iota(jnp.int32, (tb, 1), 0)
    per_row = jnp.where(rows < total_rows, per_row, jnp.float32(0.0))

    acc_ref[...] += jnp.sum(per_row, axis=0, keepdims=True)

    @pl.when(i == pl.num_programs(0) - 1)
    def _finalize():
        o_ref[...] = acc_ref[...] * jnp.float32(1.0 / total_rows)


def adv_loss_for_target_max(inp, target=None, *, block_rows=1024,
                            fallback_below_elems=0, interpret=False):
    """inp: [B, C] logits. target: [B] (unused; mirrors the torch signature).

    Returns the scalar loss (float32), identical to the PyTorch forward.
    """
    del target  # only target.size(0) is referenced in torch; math ignores it
    B, C = inp.shape

    # Optional tiny-input escape hatch (fixed pallas_call overhead dominates
    # below a few tens of K elements). Disabled by default so the kernel path
    # is always exercised.
    if B * C < fallback_below_elems:
        prob = jax.nn.softmax(inp.astype(jnp.float32), axis=1)
        p_last = prob[:, -1]
        w = jnp.where(p_last == 1.0, 1.0 - 1e-6, 1.0)
        return jnp.mean(jnp.log(1.0 - p_last * w))

    # Tile size: multiple of 16 rows, capped so a double-buffered f32 tile
    # (plus in-kernel f32 intermediates) stays well under v7x's 64 MiB VMEM.
    tile_budget_bytes = 4 * 1024 * 1024                # ~4 MiB of f32 per tile
    max_rows = max(16, tile_budget_bytes // max(1, C * 4))
    tb = min(int(block_rows), max_rows, _round_up(B, 16))
    tb = max(16, (tb // 16) * 16)

    num_tiles = -(-B // tb)
    b_pad = num_tiles * tb
    x = inp if b_pad == B else jnp.pad(inp, ((0, b_pad - B), (0, 0)))

    kernel = functools.partial(_adv_loss_kernel, total_rows=B)

    out = pl.pallas_call(
        kernel,
        out_shape=jax.ShapeDtypeStruct((1, 1), jnp.float32),
        grid=(num_tiles,),
        in_specs=[pl.BlockSpec((tb, C), lambda i: (i, 0))],
        out_specs=pl.BlockSpec((1, 1), lambda i: (0, 0)),
        scratch_shapes=[pltpu.VMEM((1, 1), jnp.float32)],
        compiler_params=pltpu.CompilerParams(
            dimension_semantics=("arbitrary",),   # sequential reduction axis
            vmem_limit_bytes=48 * 1024 * 1024,
        ),
        interpret=interpret,
    )(x)
    return out[0, 0]


def _reference(inp, target=None):
    # Pure-JAX reference of the PyTorch forward for sanity checks.
    del target
    prob = jax.nn.softmax(inp.astype(jnp.float32), axis=1)
    p_last = prob[:, -1]
    w = jnp.where(p_last == 1.0, 1.0 - 1e-6, 1.0)
    return jnp.mean(jnp.log(1.0 - p_last * w))


if __name__ == "__main__":
    key = jax.random.PRNGKey(0)
    k1, k2, k3, k4 = jax.random.split(key, 4)

    # Primary small-shape test consistent with a [batch, num_classes] input.
    B, C = 8, 32
    x = jax.random.normal(k1, (B, C), dtype=jnp.float32)
    target = jax.random.randint(k2, (B,), 0, C, dtype=jnp.int32)

    loss = adv_loss_for_target_max(x, target)
    jax.block_until_ready(loss)
    ref = _reference(x, target)
    assert jnp.allclose(loss, ref, atol=1e-5, rtol=1e-5), (loss, ref)

    # Multi-tile + remainder-row test (forces accumulation across grid steps
    # and exercises the padded-row masking path).
    B2, C2 = 40, 48
    x2 = jax.random.normal(k3, (B2, C2), dtype=jnp.float32)
    t2 = jax.random.randint(k4, (B2,), 0, C2, dtype=jnp.int32)
    loss2 = adv_loss_for_target_max(x2, t2, block_rows=16)
    jax.block_until_ready(loss2)
    ref2 = _reference(x2, t2)
    assert jnp.allclose(loss2, ref2, atol=1e-5, rtol=1e-5), (loss2, ref2)

    print("KERNEL_OK")
</pallas_src>

<mosaic_0001>
module attributes {stable_mosaic.version = 11 : i64} {
  func.func @_adv_loss_kernel(%arg0: i32, %arg1: memref<16x32xf32, #tpu.memory_space<vmem>>, %arg2: memref<1x1xf32, #tpu.memory_space<vmem>>, %arg3: memref<1x1xf32, #tpu.memory_space<vmem>>) attributes {dimension_semantics = [#tpu.dimension_semantics<arbitrary>], iteration_bounds = array<i64: 1>, scalar_prefetch = 0 : i64, scratch_operands = 1 : i64, tpu.core_type = #tpu.core_type<tc>, window_params = [{transform_indices = @transform_0, window_bounds = array<i64: 16, 32>}, {pipeline_mode = #tpu.pipeline_mode<synchronous>, transform_indices = @transform_1, window_bounds = array<i64: 1, 1>}]} {
    %c0_i32 = arith.constant 0 : i32
    %0 = arith.cmpi eq, %arg0, %c0_i32 : i32
    %1 = arith.extui %0 : i1 to i32
    %c0_i32_0 = arith.constant 0 : i32
    %2 = arith.cmpi ne, %1, %c0_i32_0 : i32
    scf.if %2 {
      %cst_15 = arith.constant 0.000000e+00 : f32
      %41 = vector.broadcast %cst_15 : f32 to vector<1x1xf32>
      %c0_16 = arith.constant 0 : index
      %c0_17 = arith.constant 0 : index
      %42 = vector.load %arg3[%c0_16, %c0_17] : memref<1x1xf32, #tpu.memory_space<vmem>>, vector<1x1xf32>
      tpu.vector_store %arg3[%c0_16, %c0_17], %41 {strides = array<i32>} : memref<1x1xf32, #tpu.memory_space<vmem>>, vector<1x1xf32>,
    } else {
    }
    %c0 = arith.constant 0 : index
    %c0_1 = arith.constant 0 : index
    %3 = vector.load %arg1[%c0, %c0_1] : memref<16x32xf32, #tpu.memory_space<vmem>>, vector<16x32xf32>
    %cst = arith.constant dense<0xFF800000> : vector<16xf32>
    %4 = vector.multi_reduction <maximumf>, %3, %cst [1] : vector<16x32xf32> to vector<16xf32>
    %5 = vector.shape_cast %4 : vector<16xf32> to vector<16x1xf32>
    %6 = vector.extract_strided_slice %3 {offsets = [0, 31], sizes = [16, 1], strides = [1, 1]} : vector<16x32xf32> to vector<16x1xf32>
    %7 = vector.broadcast %5 : vector<16x1xf32> to vector<16x32xf32>
    %8 = arith.subf %3, %7 : vector<16x32xf32>
    %9 = math.exp %8 : vector<16x32xf32>
    %cst_2 = arith.constant dense<0.000000e+00> : vector<16xf32>
    %10 = vector.multi_reduction <add>, %9, %cst_2 [1] : vector<16x32xf32> to vector<16xf32>
    %11 = vector.shape_cast %10 : vector<16xf32> to vector<16x1xf32>
    %12 = arith.subf %6, %5 : vector<16x1xf32>
    %13 = math.exp %12 : vector<16x1xf32>
    %14 = tpu.reciprocal %11 : vector<16x1xf32> -> vector<16x1xf32>
    %15 = arith.mulf %13, %14 : vector<16x1xf32>
    %cst_3 = arith.constant 1.000000e+00 : f32
    %16 = vector.broadcast %cst_3 : f32 to vector<16x1xf32>
    %17 = arith.cmpf oeq, %15, %16 : vector<16x1xf32>
    %cst_4 = arith.constant 0.999998986 : f32
    %cst_5 = arith.constant 1.000000e+00 : f32
    %18 = vector.broadcast %cst_4 : f32 to vector<16x1xf32>
    %19 = vector.broadcast %cst_5 : f32 to vector<16x1xf32>
    %20 = arith.select %17, %18, %19 : vector<16x1xi1>, vector<16x1xf32>
    %21 = arith.mulf %15, %20 : vector<16x1xf32>
    %cst_6 = arith.constant 1.000000e+00 : f32
    %22 = vector.broadcast %cst_6 : f32 to vector<16x1xf32>
    %23 = arith.subf %22, %21 : vector<16x1xf32>
    %24 = math.log %23 : vector<16x1xf32>
    %c16_i32 = arith.constant 16 : i32
    %25 = arith.muli %arg0, %c16_i32 : i32
    %26 = tpu.iota {dimensions = array<i32: 0>} : vector<16x1xi32>
    %27 = vector.broadcast %25 : i32 to vector<16x1xi32>
    %28 = arith.addi %27, %26 : vector<16x1xi32>
    %c8_i32 = arith.constant 8 : i32
    %29 = vector.broadcast %c8_i32 : i32 to vector<16x1xi32>
    %30 = arith.cmpi slt, %28, %29 : vector<16x1xi32>
    %cst_7 = arith.constant 0.000000e+00 : f32
    %31 = vector.broadcast %cst_7 : f32 to vector<16x1xf32>
    %32 = arith.select %30, %24, %31 : vector<16x1xi1>, vector<16x1xf32>
    %c0_8 = arith.constant 0 : index
    %c0_9 = arith.constant 0 : index
    %33 = vector.load %arg3[%c0_8, %c0_9] : memref<1x1xf32, #tpu.memory_space<vmem>>, vector<1x1xf32>
    %cst_10 = arith.constant dense<0.000000e+00> : vector<1xf32>
    %34 = vector.multi_reduction <add>, %32, %cst_10 [0] : vector<16x1xf32> to vector<1xf32>
    %35 = vector.shape_cast %34 : vector<1xf32> to vector<1x1xf32>
    %36 = arith.addf %33, %35 : vector<1x1xf32>
    %c0_11 = arith.constant 0 : index
    %c0_12 = arith.constant 0 : index
    %37 = vector.load %arg3[%c0_11, %c0_12] : memref<1x1xf32, #tpu.memory_space<vmem>>, vector<1x1xf32>
    tpu.vector_store %arg3[%c0_11, %c0_12], %36 {strides = array<i32>} : memref<1x1xf32, #tpu.memory_space<vmem>>, vector<1x1xf32>,
    %c0_i32_13 = arith.constant 0 : i32
    %38 = arith.cmpi eq, %arg0, %c0_i32_13 : i32
    %39 = arith.extui %38 : i1 to i32
    %c0_i32_14 = arith.constant 0 : i32
    %40 = arith.cmpi ne, %39, %c0_i32_14 : i32
    scf.if %40 {
      %c0_15 = arith.constant 0 : index
      %c0_16 = arith.constant 0 : index
      %41 = vector.load %arg3[%c0_15, %c0_16] : memref<1x1xf32, #tpu.memory_space<vmem>>, vector<1x1xf32>
      %cst_17 = arith.constant 1.250000e-01 : f32
      %42 = vector.broadcast %cst_17 : f32 to vector<1x1xf32>
      %43 = arith.mulf %41, %42 : vector<1x1xf32>
      %c0_18 = arith.constant 0 : index
      %c0_19 = arith.constant 0 : index
      %44 = vector.load %arg2[%c0_18, %c0_19] : memref<1x1xf32, #tpu.memory_space<vmem>>, vector<1x1xf32>
      tpu.vector_store %arg2[%c0_18, %c0_19], %43 {strides = array<i32>} : memref<1x1xf32, #tpu.memory_space<vmem>>, vector<1x1xf32>,
    } else {
    }
    return
  }
  func.func @transform_0(%arg0: i32) -> (i32, i32) {
    %c0_i32 = arith.constant 0 : i32
    %c0_i32_0 = arith.constant 0 : i32
    return %arg0, %c0_i32 : i32, i32
  }
  func.func @transform_1(%arg0: i32) -> (i32, i32) {
    %c0_i32 = arith.constant 0 : i32
    %c0_i32_0 = arith.constant 0 : i32
    %c0_i32_1 = arith.constant 0 : i32
    return %c0_i32, %c0_i32_0 : i32, i32
  }
}

</mosaic_0001>

<llo_original>
// kernel: tpu_custom_call.1
$region0: #{tpu_custom_call.1}
  #allocation0 [shape = 'u32[]', space=smem, size = 0x4, offset = 0x4, fixed_abs, tag = 'smem constant byte address 0x4 - core index']
  #allocation1 [shape = 'u32[144,128]{1,0:T(1,128)}', space=vmem, size = 0x12000, scoped, tag = 'internal scratch']
  #allocation2 [shape = 'f32[1,1]{1,0:T(1,128)}', space=vmem, size = 0x200, scoped, tag = 'scratch operand']
  %s0 = inlined_call_operand.hbm [shape: f32[16,32], index: 0, kind: input, shape index: {}]
  %s1 = inlined_call_operand.hbm [shape: f32[1,1], index: 1, kind: output, shape index: {}]
  %s2 = sld [smem:[#allocation0]]
  $region26: #{tpu_custom_call.1} parent=0
    _
  %s4 = ssub.s32 1, %s2
  %s5 = scalar_select 0, %s4, %s2
  $region1: #{tpu_custom_call.1} parent=0
    #allocation3 [shape = 'u8[8192]{0}', space=vmem, size = 0x2000, scoped, tag = 'input window, operand 0, single buffered']
    #allocation4 [shape = 's32[1]{0}', space=sflag, size = 0x4, scoped, tag = 'scoped memory for tpu_custom_call.1']
    #allocation5 [shape = 's32[1]{0}', space=sflag, size = 0x4, scoped, tag = 'scoped memory for tpu_custom_call.1']
    #allocation6 [shape = 'u8[512]{0}', space=vmem, size = 0x400, scoped, tag = 'output window, operand 0, single buffered']
    %6 = vsyncpa [#allocation4], 0
    %7 = vsyncpa [#allocation5], 0
    // Predicated region
    $region2: #{tpu_custom_call.1} parent=1 // pred_check
      _
    $region3: #{tpu_custom_call.1} parent=1 // pred_check_branch
      %9 = sbr.rel (0) target = $region5
    $region4: #{tpu_custom_call.1} parent=1 // pred_region
      %s11 = ssub.s32 256, 256
      %12 = vsyncadd [#allocation4], %s11
      %s13 = sshll.u32 [#allocation3], 4
      %s14 = int_to_ptr.vmem [resolvable:$true] %s13
      %19 = dma.hbm_to_vmem [thread:$0]  %s0, 256, %s14, [#allocation4], 128, 128, 8
    $region5: #{tpu_custom_call.1} parent=1 // pred_fallthru
      _
    // Predicated region
    $region6: #{tpu_custom_call.1} parent=1 // pred_check
      _
    $region7: #{tpu_custom_call.1} parent=1 // pred_check_branch
      %21 = sbr.rel (0) target = $region9
    $region8: #{tpu_custom_call.1} parent=1 // pred_region
      %22 = dma.done [#allocation4], 256
    $region9: #{tpu_custom_call.1} parent=1 // pred_fallthru
      _
    %p23 = scmp.eq.s32.totalorder 0, 0
    // Predicated region
    $region10: #{tpu_custom_call.1} parent=1 // pred_check
      %p24 = pneg %p23
    $region11: #{tpu_custom_call.1} parent=1 // pred_check_branch
      %26 = sbr.rel (%p24) target = $region13
    $region12: #{tpu_custom_call.1} parent=1 // pred_region
      %vm27 = vcmask 0
      %28 = vst.msk [vmem:[#allocation2] sm:$0x1] %vm27, 0.0
    $region13: #{tpu_custom_call.1} parent=1 // pred_fallthru
      _
    %v29 = vld [vmem:[#allocation3] sm:$0xff]
    %v30 = vld [vmem:[#allocation3 + $0x8] sm:$0xff]
    %vm31 = vcmask 261120
    %v32 = vsel %vm31, %v29, -inf
    %33 = vmax.xlane.f32.xlu0 %v32
    %v34 = vpop.xlane.xlu0 %33
    %v35 = vsel %vm31, %v30, -inf
    %36 = vmax.xlane.f32.xlu0 %v35
    %v37 = vpop.xlane.xlu0 %36
    %v38 = vsub.f32 %v29, %v34
    %v39 = vsub.f32 %v30, %v37
    %v40 = vmul.f32 %v38, 1.442695
    %v41 = vpow.pop %v40
    %v42 = vmul.f32 %v39, 1.442695
    %v43 = vpow.pop %v42
    %v44 = vsel %vm31, %v41, 0.0
    %45 = vadd.xlane.f32.xlu0 %v44
    %v46 = vpop.xlane.xlu0 %45
    %v47 = vsel %vm31, %v43, 0.0
    %48 = vadd.xlane.f32.xlu0 %v47
    %v49 = vpop.xlane.xlu0 %48
    %v50 = vrcp.pop %v46
    %v51 = vrcp.pop %v49
    %v52 = vmul.f32 %v41, %v50
    %v53 = vmul.f32 %v43, %v51
    %vm54 = vcmp.eq.f32.partialorder %v52, 1.0
    %vm55 = vcmp.eq.f32.partialorder %v53, 1.0
    %v56 = vsel %vm54, 0.999999, 1.0
    %v57 = vsel %vm55, 0.999999, 1.0
    %v58 = vmul.f32 %v52, %v56
    %v59 = vmul.f32 %v53, %v57
    %v60 = vsub.f32 1.0, %v58
    %v61 = vsub.f32 1.0, %v59
    %v62 = vlog2.pop %v60
    %v63 = vmul.f32 %v62, 0.6931472
    %v64 = vlog2.pop %v61
    %v65 = vmul.f32 %v64, 0.6931472
    %s66 = smul.u32 0, 16
    %v67 = vlaneseq
    %v68 = vshrl.u32 %v67, 7
    %v69 = vadd.s32 %v68, 8
    %v70 = vstv %s66
    %v71 = vadd.s32 %v70, %v68
    %v72 = vadd.s32 %v70, %v69
    %vm73 = vcmp.lt.s32.totalorder %v71, 8
    %vm74 = vcmp.lt.s32.totalorder %v72, 8
    %v75 = vsel %vm73, %v63, 0.0
    %v76 = vsel %vm74, %v65, 0.0
    %v77 = vld [vmem:[#allocation2] sm:$0x1]
    %vm78 = vcmask 261368
    %v79 = vsel %vm78, %v75, 0.0
    %v80 = vsel %vm78, %v76, 0.0
    %v81 = vadd.f32 %v79, %v80
    %v82 = vrot.slane %v81, 4
    %v83 = vadd.f32 %v81, %v82
    %v84 = vrot.slane %v83, 2
    %v85 = vadd.f32 %v83, %v84
    %v86 = vrot.slane %v85, 1
    %v87 = vadd.f32 %v85, %v86
    %v90 = vunpack.c.l.s4 1966171168
    %v91 = vunpack.c.0.s8 %v90
    %v92 = vlaneseq
    %v93 = vshrl.u32 %v92, 7
    %v94 = vsub.s32 %v91, %v93
    %v95 = vrot.slane %v87, %v94
    %v97 = vunpack.c.l.s4 1966171168
    %v98 = vunpack.c.0.s8 %v97
    %v99 = vlaneseq
    %v100 = vshrl.u32 %v99, 7
    %v101 = vsub.s32 %v98, %v100
    %v102 = vrot.slane %v95, %v101
    %103 = vrot.lane.b32.xlu0 %v102, 97
    %v104 = vpop.permute.xlu0 %103
    %v106 = vadd.f32 %v77, %v104
    %vm107 = vcmask 0
    %108 = vst.msk [vmem:[#allocation2] sm:$0x1] %vm107, %v106
    // Predicated region
    $region14: #{tpu_custom_call.1} parent=1 // pred_check
      %p109 = pneg %p23
    $region15: #{tpu_custom_call.1} parent=1 // pred_check_branch
      %111 = sbr.rel (%p109) target = $region17
    $region16: #{tpu_custom_call.1} parent=1 // pred_region
      %v112 = vld [vmem:[#allocation2] sm:$0x1]
      %v113 = vmul.f32 %v112, 0.125
      %114 = vst.msk [vmem:[#allocation6] sm:$0x1] %vm107, %v113
    $region17: #{tpu_custom_call.1} parent=1 // pred_fallthru
      _
    // Predicated region
    $region18: #{tpu_custom_call.1} parent=1 // pred_check
      _
    $region19: #{tpu_custom_call.1} parent=1 // pred_check_branch
      %116 = sbr.rel (0) target = $region21
    $region20: #{tpu_custom_call.1} parent=1 // pred_region
      %s118 = ssub.s32 16, 16
      %119 = vsyncadd [#allocation5], %s118
      %s121 = sshll.u32 [#allocation6], 4
      %s122 = int_to_ptr.vmem [resolvable:$true] %s121
      %124 = dma.vmem_to_hbm [thread:$0]  %s122, 16, %s1, [#allocation5]
    $region21: #{tpu_custom_call.1} parent=1 // pred_fallthru
      _
    // Predicated region
    $region22: #{tpu_custom_call.1} parent=1 // pred_check
      _
    $region23: #{tpu_custom_call.1} parent=1 // pred_check_branch
      %126 = sbr.rel (0) target = $region25
    $region24: #{tpu_custom_call.1} parent=1 // pred_region
      %127 = dma.done [#allocation5], 16
    $region25: #{tpu_custom_call.1} parent=1 // pred_fallthru
      _
    %128 = vsyncpa [#allocation4], 1
    %129 = vsyncpa [#allocation5], 1

</llo_original>
